<compile_context>
chip_gen: v7x
topology: tpu7x:2x2x1
jax: 0.10.0
libtpu: 0.0.40
codegen_flags: <defaults>
</compile_context>

<pallas_src>
from functools import partial

import jax
import jax.numpy as jnp
from jax.experimental import pallas as pl
from jax.experimental.pallas import tpu as pltpu


def _round_up(v, m):
    return ((v + m - 1) // m) * m


def _customnn_kernel(x_ref, s1_ref, s2_ref, out_ref, *, k1, k2):
    """Entire forward = relu(x @ W1 + b1) @ W2 + b2.

    x_ref : (B, 3n)            raw input
    s1_ref: (rows1, mid_pad)   rows 0:k1 = fused layer-1 weights, row k1 = bias
    s2_ref: (rows2, n_pad)     rows 0:k2 = fused output weights,  row k2 = bias
    """
    f32 = jnp.float32

    # Layer 1: fused X/r/c Linears + block-diagonal stride-3 Conv1d, + ReLU.
    # Static, tile-aligned ref slices (k1 = 3n is a multiple of 8 here).
    h = jnp.maximum(
        jnp.dot(x_ref[...], s1_ref[:k1, :], preferred_element_type=f32)
        + s1_ref[k1:k1 + 1, :],
        0.0)                                                     # (B, mid_pad)

    # Layer 2: output Linear with the conv mean-pool pre-folded into the
    # weights host-side (wo_interaction / n tiled over the n conv blocks).
    out_ref[...] = (
        jnp.dot(h, s2_ref[:k2, :], preferred_element_type=f32)
        + s2_ref[k2:k2 + 1, :])                                  # (B, n_pad)


@partial(jax.jit, static_argnames=("n", "hidden"))
def customnn_forward(x, packed, n, hidden):
    """x: (B, 3n) float32; packed: output of pack_params(...)."""
    del hidden  # shapes carried by the packed slabs
    B = x.shape[0]
    n_pad = packed["s2"].shape[1]
    k1 = 3 * n
    k2 = packed["s1"].shape[1]          # mid_pad = round_up(3H + nH, 128)

    vmem = pl.BlockSpec(memory_space=pltpu.MemorySpace.VMEM)
    out_pad = pl.pallas_call(
        partial(_customnn_kernel, k1=k1, k2=k2),
        out_shape=jax.ShapeDtypeStruct((B, n_pad), jnp.float32),
        in_specs=[vmem, vmem, vmem],
        out_specs=vmem,
    )(x, packed["s1"], packed["s2"])
    return out_pad[:, :n]


def pack_params(params, n, hidden):
    """Pack the 10 PyTorch-style params into 2 kernel weight slabs (host-side, once)."""
    f32 = jnp.float32
    h = hidden
    k1 = 3 * n                                   # layer-1 contraction (raw input width)
    mid = 3 * h + n * h                          # layer-1 output width (hx|hr|hc|conv blocks)
    mid_pad = _round_up(mid, 128)                # lane-pad; padding cols are exactly zero
    n_pad = _round_up(n, 128)                    # lane-dense output
    rows1 = _round_up(k1 + 1, 8)                 # + bias row, sublane-pad
    rows2 = _round_up(mid_pad + 1, 8)

    # ---- Slab 1: fused first layer (X/r/c Linears + block-diagonal conv) ----
    s1 = jnp.zeros((rows1, mid_pad), f32)
    # Interleaved over raw input columns: row 3i -> X weights, 3i+1 -> r, 3i+2 -> c.
    s1 = s1.at[0:k1:3, 0:h].set(params["wx"])
    s1 = s1.at[1:k1:3, h:2 * h].set(params["wr"])
    s1 = s1.at[2:k1:3, 2 * h:3 * h].set(params["wc"])
    # Conv1d(k=3, stride=3) as a block-diagonal linear map: patch j uses rows
    # 3j..3j+2 and writes output block [3H + jH : 3H + (j+1)H].
    for j in range(n):
        s1 = s1.at[3 * j:3 * j + 3, 3 * h + j * h:3 * h + (j + 1) * h].set(params["wk"])
    # Bias row (applied with a VPU broadcast-add inside the kernel).
    s1 = s1.at[k1, 0:h].set(params["bx"][0])
    s1 = s1.at[k1, h:2 * h].set(params["br"][0])
    s1 = s1.at[k1, 2 * h:3 * h].set(params["bc"][0])
    s1 = s1.at[k1, 3 * h:3 * h + n * h].set(jnp.tile(params["bk"][0], n))

    # ---- Slab 2: output layer with the conv mean-pool folded in ----
    s2 = jnp.zeros((rows2, n_pad), f32)
    s2 = s2.at[0:3 * h, 0:n].set(params["wo"][0:3 * h, :])
    wo_interaction = params["wo"][3 * h:4 * h, :] / n            # (H, n)
    s2 = s2.at[3 * h:3 * h + n * h, 0:n].set(jnp.tile(wo_interaction, (n, 1)))
    s2 = s2.at[mid_pad, 0:n].set(params["bo"][0])                # bias row
    return dict(s1=s1, s2=s2)


def init_params(n, hidden, key):
    """Deterministic PyTorch-style (uniform +-1/sqrt(fan_in)) init, stored transposed."""
    keys = jax.random.split(key, 5)

    def lin(k, fan_in, fan_out):
        bound = 1.0 / float(fan_in) ** 0.5
        w = jax.random.uniform(k, (fan_in, fan_out), jnp.float32, -bound, bound)
        b = jax.random.uniform(jax.random.fold_in(k, 1), (1, fan_out),
                               jnp.float32, -bound, bound)
        return w, b

    wx, bx = lin(keys[0], n, hidden)             # X_layer:  W.T, b
    wr, br = lin(keys[1], n, hidden)             # r_layer
    wc, bc = lin(keys[2], n, hidden)             # c_layer
    wk, bk = lin(keys[3], 3, hidden)             # Conv1d weight (H,1,3) stored as (3,H)
    wo, bo = lin(keys[4], 4 * hidden, n)         # output_layer
    return dict(wx=wx, bx=bx, wr=wr, br=br, wc=wc, bc=bc,
                wk=wk, bk=bk, wo=wo, bo=bo)


def reference_forward(x, params, n, hidden):
    """Pure-JAX reference mirroring the (patched) PyTorch forward."""
    # TODO(synk): the reference torch.cat([X_out, r_out, c_out, interaction_out], dim=1)
    # is ill-formed (2-D vs 3-D tensors) for the module as written; we mean-pool the
    # conv output over its length dimension so `combined` has hidden_dim*4 features,
    # matching output_layer's in_features.
    del hidden
    B = x.shape[0]
    X, R, C = x[:, 0::3], x[:, 1::3], x[:, 2::3]
    hx = jax.nn.relu(X @ params["wx"] + params["bx"])
    hr = jax.nn.relu(R @ params["wr"] + params["br"])
    hc = jax.nn.relu(C @ params["wc"] + params["bc"])
    conv = jax.nn.relu(x.reshape(B, n, 3) @ params["wk"] + params["bk"])  # (B, n, H)
    hi = jnp.mean(conv, axis=1)                                           # (B, H)
    combined = jnp.concatenate([hx, hr, hc, hi], axis=1)
    return combined @ params["wo"] + params["bo"]


if __name__ == "__main__":
    n, hidden_dim, batch = 8, 32, 2
    key = jax.random.PRNGKey(0)
    pkey, xkey = jax.random.split(key)

    params = init_params(n, hidden_dim, pkey)
    packed = pack_params(params, n, hidden_dim)
    x = jax.random.normal(xkey, (batch, 3 * n), jnp.float32)   # input_tensor (B, 3n)

    out = customnn_forward(x, packed, n, hidden_dim)
    out = jax.block_until_ready(out)

    ref = reference_forward(x, params, n, hidden_dim)
    assert out.shape == (batch, n), out.shape
    assert jnp.allclose(out, ref, atol=1e-4, rtol=1e-4), "mismatch vs JAX reference"
    print("KERNEL_OK")
</pallas_src>

<mosaic_0001>
module attributes {stable_mosaic.version = 11 : i64} {
  func.func @_customnn_kernel(%arg0: memref<2x24xf32, #tpu.memory_space<vmem>>, %arg1: memref<32x384xf32, #tpu.memory_space<vmem>>, %arg2: memref<392x128xf32, #tpu.memory_space<vmem>>, %arg3: memref<2x128xf32, #tpu.memory_space<vmem>>) attributes {dimension_semantics = [], scalar_prefetch = 0 : i64, scratch_operands = 0 : i64, tpu.core_type = #tpu.core_type<tc>} {
    %c0 = arith.constant 0 : index
    %c0_0 = arith.constant 0 : index
    %0 = vector.load %arg0[%c0, %c0_0] : memref<2x24xf32, #tpu.memory_space<vmem>>, vector<2x24xf32>
    %c0_1 = arith.constant 0 : index
    %c0_2 = arith.constant 0 : index
    %1 = vector.load %arg1[%c0_1, %c0_2] : memref<32x384xf32, #tpu.memory_space<vmem>>, vector<24x384xf32>
    %cst = arith.constant dense<0.000000e+00> : vector<2x384xf32>
    %2 = tpu.matmul %0, %1, %cst {dimension_numbers = #tpu.dot_dimension_numbers<[1], [0], [0], [1], [0, 0, 1, 1], [], []>} : vector<2x24xf32>, vector<24x384xf32>, vector<2x384xf32> -> vector<2x384xf32>
    %c24 = arith.constant 24 : index
    %c0_3 = arith.constant 0 : index
    %3 = vector.load %arg1[%c24, %c0_3] : memref<32x384xf32, #tpu.memory_space<vmem>>, vector<1x384xf32>
    %4 = vector.broadcast %3 : vector<1x384xf32> to vector<2x384xf32>
    %5 = arith.addf %2, %4 : vector<2x384xf32>
    %cst_4 = arith.constant 0.000000e+00 : f32
    %6 = vector.broadcast %cst_4 : f32 to vector<2x384xf32>
    %7 = arith.maximumf %5, %6 : vector<2x384xf32>
    %c0_5 = arith.constant 0 : index
    %c0_6 = arith.constant 0 : index
    %8 = vector.load %arg2[%c0_5, %c0_6] : memref<392x128xf32, #tpu.memory_space<vmem>>, vector<384x128xf32>
    %cst_7 = arith.constant dense<0.000000e+00> : vector<2x128xf32>
    %9 = tpu.matmul %7, %8, %cst_7 {dimension_numbers = #tpu.dot_dimension_numbers<[1], [0], [0], [1], [0, 0, 1, 1], [], []>} : vector<2x384xf32>, vector<384x128xf32>, vector<2x128xf32> -> vector<2x128xf32>
    %c384 = arith.constant 384 : index
    %c0_8 = arith.constant 0 : index
    %10 = vector.load %arg2[%c384, %c0_8] : memref<392x128xf32, #tpu.memory_space<vmem>>, vector<1x128xf32>
    %11 = vector.broadcast %10 : vector<1x128xf32> to vector<2x128xf32>
    %12 = arith.addf %9, %11 : vector<2x128xf32>
    %c0_9 = arith.constant 0 : index
    %c0_10 = arith.constant 0 : index
    %13 = vector.load %arg3[%c0_9, %c0_10] : memref<2x128xf32, #tpu.memory_space<vmem>>, vector<2x128xf32>
    tpu.vector_store %arg3[%c0_9, %c0_10], %12 {strides = array<i32>} : memref<2x128xf32, #tpu.memory_space<vmem>>, vector<2x128xf32>,
    return
  }
}

</mosaic_0001>

<llo_original>
// kernel: customnn_forward.1
$region0: #{customnn_forward.1}
  #allocation0 [shape = 'u32[]', space=smem, size = 0x4, offset = 0x4, fixed_abs, tag = 'smem constant byte address 0x4 - core index']
  #allocation1 [shape = 'u32[144,128]{1,0:T(1,128)}', space=vmem, size = 0x12000, scoped, tag = 'internal scratch']
  %s0 = inlined_call_operand.hbm [shape: f32[2,24], index: 0, kind: input, shape index: {}]
  %s1 = inlined_call_operand.hbm [shape: f32[32,384], index: 1, kind: input, shape index: {}]
  %s2 = inlined_call_operand.hbm [shape: f32[392,128], index: 2, kind: input, shape index: {}]
  %s3 = inlined_call_operand.hbm [shape: f32[2,128], index: 3, kind: output, shape index: {}]
  %s4 = sld [smem:[#allocation0]]
  $region34: #{customnn_forward.1} parent=0
    _
  %s6 = ssub.s32 1, %s4
  %s7 = scalar_select 0, %s6, %s4
  $region1: #{customnn_forward.1} parent=0
    #allocation2 [shape = 'u8[1024]{0}', space=vmem, size = 0x400, scoped, tag = 'input window, operand 0, single buffered']
    #allocation3 [shape = 's32[1]{0}', space=sflag, size = 0x4, scoped, tag = 'scoped memory for customnn_forward.1']
    #allocation4 [shape = 's32[1]{0}', space=sflag, size = 0x4, scoped, tag = 'scoped memory for customnn_forward.1']
    #allocation5 [shape = 'u8[49152]{0}', space=vmem, size = 0xc000, scoped, tag = 'input window, operand 1, single buffered']
    #allocation6 [shape = 's32[1]{0}', space=sflag, size = 0x4, scoped, tag = 'scoped memory for customnn_forward.1']
    #allocation7 [shape = 'u8[200704]{0}', space=vmem, size = 0x31000, scoped, tag = 'input window, operand 2, single buffered']
    #allocation8 [shape = 'u8[1024]{0}', space=vmem, size = 0x400, scoped, tag = 'output window, operand 0, single buffered']
    %8 = vsyncpa [#allocation3], 0
    %9 = vsyncpa [#allocation6], 0
    %10 = vsyncpa [#allocation4], 0
    // Predicated region
    $region2: #{customnn_forward.1} parent=1 // pred_check
      _
    $region3: #{customnn_forward.1} parent=1 // pred_check_branch
      %12 = sbr.rel (0) target = $region5
    $region4: #{customnn_forward.1} parent=1 // pred_region
      %s14 = ssub.s32 32, 32
      %15 = vsyncadd [#allocation3], %s14
      %s17 = sshll.u32 [#allocation2], 4
      %s18 = int_to_ptr.vmem [resolvable:$true] %s17
      %20 = dma.hbm_to_vmem [thread:$0]  %s0, 32, %s18, [#allocation3]
    $region5: #{customnn_forward.1} parent=1 // pred_fallthru
      _
    // Predicated region
    $region6: #{customnn_forward.1} parent=1 // pred_check
      _
    $region7: #{customnn_forward.1} parent=1 // pred_check_branch
      %22 = sbr.rel (0) target = $region9
    $region8: #{customnn_forward.1} parent=1 // pred_region
      %s24 = ssub.s32 1536, 1536
      %25 = vsyncadd [#allocation6], %s24
      %s26 = sshll.u32 [#allocation5], 4
      %s27 = int_to_ptr.vmem [resolvable:$true] %s26
      %32 = dma.hbm_to_vmem [thread:$0]  %s1, 1536, %s27, [#allocation6], 384, 384, 24
    $region9: #{customnn_forward.1} parent=1 // pred_fallthru
      _
    // Predicated region
    $region10: #{customnn_forward.1} parent=1 // pred_check
      _
    $region11: #{customnn_forward.1} parent=1 // pred_check_branch
      %34 = sbr.rel (0) target = $region13
    $region12: #{customnn_forward.1} parent=1 // pred_region
      %s36 = ssub.s32 6272, 6272
      %37 = vsyncadd [#allocation6], %s36
      %s38 = sshll.u32 [#allocation7], 4
      %s39 = int_to_ptr.vmem [resolvable:$true] %s38
      %44 = dma.hbm_to_vmem [thread:$0]  %s2, 6272, %s39, [#allocation6], 128, 128, 8
    $region13: #{customnn_forward.1} parent=1 // pred_fallthru
      _
    // Predicated region
    $region14: #{customnn_forward.1} parent=1 // pred_check
      _
    $region15: #{customnn_forward.1} parent=1 // pred_check_branch
      %46 = sbr.rel (0) target = $region17
    $region16: #{customnn_forward.1} parent=1 // pred_region
      %47 = dma.done [#allocation3], 32
    $region17: #{customnn_forward.1} parent=1 // pred_fallthru
      _
    // Predicated region
    $region18: #{customnn_forward.1} parent=1 // pred_check
      _
    $region19: #{customnn_forward.1} parent=1 // pred_check_branch
      %49 = sbr.rel (0) target = $region21
    $region20: #{customnn_forward.1} parent=1 // pred_region
      %50 = dma.done [#allocation6], 1536
    $region21: #{customnn_forward.1} parent=1 // pred_fallthru
      _
    // Predicated region
    $region22: #{customnn_forward.1} parent=1 // pred_check
      _
    $region23: #{customnn_forward.1} parent=1 // pred_check_branch
      %52 = sbr.rel (0) target = $region25
    $region24: #{customnn_forward.1} parent=1 // pred_region
      %53 = dma.done [#allocation6], 6272
    $region25: #{customnn_forward.1} parent=1 // pred_fallthru
      _
    %v54 = vld [vmem:[#allocation2] sm:$0x3]
    %v55 = vld [vmem:[#allocation5] sm:$0xff]
    %v56 = vld [vmem:[#allocation5 + $0x8] sm:$0xff]
    %v57 = vld [vmem:[#allocation5 + $0x10] sm:$0xff]
    %v58 = vld [vmem:[#allocation5 + $0x18] sm:$0xff]
    %v59 = vld [vmem:[#allocation5 + $0x20] sm:$0xff]
    %v60 = vld [vmem:[#allocation5 + $0x28] sm:$0xff]
    %v61 = vld [vmem:[#allocation5 + $0x30] sm:$0xff]
    %v62 = vld [vmem:[#allocation5 + $0x38] sm:$0xff]
    %v63 = vld [vmem:[#allocation5 + $0x40] sm:$0xff]
    %s64 = scalar_lea.vmem [#allocation5], 72
    %v65 = vld [vmem:[%s64] ss:$8 sm:$0x7]
    %v67 = vlaneseq
    %v68 = vshrl.u32 %v67, 7
    %v69 = vsub.s32 0, %v68
    %v70 = vrot.slane %v65, %v69
    %v71 = vlaneseq
    %v72 = vshrl.u32 %v71, 7
    %v73 = vsub.s32 1, %v72
    %v74 = vrot.slane %v65, %v73
    %v75 = vlaneseq
    %v76 = vshrl.u32 %v75, 7
    %v77 = vsub.s32 2, %v76
    %v78 = vrot.slane %v65, %v77
    %vm82 = vcmask 195584
    %v84 = vsel %vm82, %v54, 0
    %86 = vmatprep.subr.mxu0 %v56
    %87 = vmatpush1.msra.mxu0 %v55
    %88 = vmatprep.subr.mxu0 %v59
    %89 = vmatpush1.msra.mxu0 %v58
    %90 = vmatprep.subr.mxu0 %v62
    %91 = vmatpush1.msra.mxu0 %v61
    %92 = vmatprep.subr.mxu0 0.0
    %93 = vmatpush1.msra.mxu0 0.0
    %94 = vmatprep.subr.mxu0 0.0
    %95 = vmatpush1.msra.mxu0 0.0
    %96 = vmatprep.subr.mxu0 0.0
    %97 = vmatpush1.msra.mxu0 0.0
    %98 = vmatprep.subr.mxu0 0.0
    %99 = vmatpush1.msra.mxu0 0.0
    %100 = vmatprep.subr.mxu0 0.0
    %101 = vmatpush1.msra.mxu0 0.0
    %102 = vmatprep.subr.mxu0 0.0
    %103 = vmatpush1.msra.mxu0 0.0
    %104 = vmatprep.subr.mxu0 0.0
    %105 = vmatpush1.msra.mxu0 0.0
    %106 = vmatprep.subr.mxu0 0.0
    %107 = vmatpush1.msra.mxu0 0.0
    %108 = vmatprep.subr.mxu0 0.0
    %109 = vmatpush1.msra.mxu0 0.0
    %110 = vmatprep.subr.mxu0 0.0
    %111 = vmatpush1.msra.mxu0 0.0
    %112 = vmatprep.subr.mxu0 0.0
    %113 = vmatpush1.msra.mxu0 0.0
    %114 = vmatprep.subr.mxu0 0.0
    %115 = vmatpush1.msra.mxu0 0.0
    %116 = vmatprep.subr.mxu0 0.0
    %117 = vmatpush1.msra.mxu0 0.0
    %118 = vmatprep.subr.mxu0 0.0
    %119 = vmatpush1.msra.mxu0 0.0
    %120 = vmatprep.subr.mxu0 0.0
    %121 = vmatpush1.msra.mxu0 0.0
    %122 = vmatprep.subr.mxu0 0.0
    %123 = vmatpush1.msra.mxu0 0.0
    %124 = vmatprep.subr.mxu0 0.0
    %125 = vmatpush1.msra.mxu0 0.0
    %126 = vmatprep.subr.mxu0 0.0
    %127 = vmatpush1.msra.mxu0 0.0
    %128 = vmatprep.subr.mxu0 0.0
    %129 = vmatpush1.msra.mxu0 0.0
    %130 = vmatprep.subr.mxu0 0.0
    %131 = vmatpush1.msra.mxu0 0.0
    %132 = vmatprep.subr.mxu0 0.0
    %133 = vmatpush1.msra.mxu0 0.0
    %134 = vmatprep.subr.mxu0 0.0
    %135 = vmatpush1.msra.mxu0 0.0
    %136 = vmatprep.subr.mxu0 0.0
    %137 = vmatpush1.msra.mxu0 0.0
    %138 = vmatprep.subr.mxu0 0.0
    %139 = vmatpush1.msra.mxu0 0.0
    %140 = vmatprep.subr.mxu0 0.0
    %141 = vmatpush1.msra.mxu0 0.0
    %142 = vmatprep.subr.mxu0 0.0
    %143 = vmatpush1.msra.mxu0 0.0
    %144 = vmatprep.subr.mxu0 0.0
    %145 = vmatpush1.msra.mxu0 0.0
    %146 = vmatprep.subr.mxu0 0.0
    %147 = vmatpush1.msra.mxu0 0.0
    %148 = vmatprep.subr.mxu0 0.0
    %149 = vmatpush1.msra.mxu0 0.0
    %150 = vmatprep.mubr.f32.mxu0 0.0
    %151 = vmatmul.mubr.f32.gmra.mrb[0].mxu0 %v84
    %v152 = vpop.f32.mrb[0].mxu0
    %v153 = vadd.f32 %v70, %v152
    %v154 = vpop.f32.mrb[0].mxu0
    %v155 = vadd.f32 %v74, %v154
    %156 = vdwg.mxu0
    %157 = vmatprep.subr.mxu0 0.0
    %158 = vmatpush1.msra.mxu0 %v57
    %159 = vmatprep.subr.mxu0 0.0
    %160 = vmatpush1.msra.mxu0 %v60
    %161 = vmatprep.subr.mxu0 0.0
    %162 = vmatpush1.msra.mxu0 %v63
    %163 = vmatprep.subr.mxu0 0.0
    %164 = vmatpush1.msra.mxu0 0.0
    %165 = vmatprep.subr.mxu0 0.0
    %166 = vmatpush1.msra.mxu0 0.0
    %167 = vmatprep.subr.mxu0 0.0
    %168 = vmatpush1.msra.mxu0 0.0
    %169 = vmatprep.subr.mxu0 0.0
    %170 = vmatpush1.msra.mxu0 0.0
    %171 = vmatprep.subr.mxu0 0.0
    %172 = vmatpush1.msra.mxu0 0.0
    %173 = vmatprep.subr.mxu0 0.0
    %174 = vmatpush1.msra.mxu0 0.0
    %175 = vmatprep.subr.mxu0 0.0
    %176 = vmatpush1.msra.mxu0 0.0
    %177 = vmatprep.subr.mxu0 0.0
    %178 = vmatpush1.msra.mxu0 0.0
    %179 = vmatprep.subr.mxu0 0.0
    %180 = vmatpush1.msra.mxu0 0.0
    %181 = vmatprep.subr.mxu0 0.0
    %182 = vmatpush1.msra.mxu0 0.0
    %183 = vmatprep.subr.mxu0 0.0
    %184 = vmatpush1.msra.mxu0 0.0
    %185 = vmatprep.subr.mxu0 0.0
    %186 = vmatpush1.msra.mxu0 0.0
    %187 = vmatprep.subr.mxu0 0.0
    %188 = vmatpush1.msra.mxu0 0.0
    %189 = vmatprep.subr.mxu0 0.0
    %190 = vmatpush1.msra.mxu0 0.0
    %191 = vmatprep.subr.mxu0 0.0
    %192 = vmatpush1.msra.mxu0 0.0
    %193 = vmatprep.subr.mxu0 0.0
    %194 = vmatpush1.msra.mxu0 0.0
    %195 = vmatprep.subr.mxu0 0.0
    %196 = vmatpush1.msra.mxu0 0.0
    %197 = vmatprep.subr.mxu0 0.0
    %198 = vmatpush1.msra.mxu0 0.0
    %199 = vmatprep.subr.mxu0 0.0
    %200 = vmatpush1.msra.mxu0 0.0
    %201 = vmatprep.subr.mxu0 0.0
    %202 = vmatpush1.msra.mxu0 0.0
    %203 = vmatprep.subr.mxu0 0.0
    %204 = vmatpush1.msra.mxu0 0.0
    %205 = vmatprep.subr.mxu0 0.0
    %206 = vmatpush1.msra.mxu0 0.0
    %207 = vmatprep.subr.mxu0 0.0
    %208 = vmatpush1.msra.mxu0 0.0
    %209 = vmatprep.subr.mxu0 0.0
    %210 = vmatpush1.msra.mxu0 0.0
    %211 = vmatprep.subr.mxu0 0.0
    %212 = vmatpush1.msra.mxu0 0.0
    %213 = vmatprep.subr.mxu0 0.0
    %214 = vmatpush1.msra.mxu0 0.0
    %215 = vmatprep.subr.mxu0 0.0
    %216 = vmatpush1.msra.mxu0 0.0
    %217 = vmatprep.subr.mxu0 0.0
    %218 = vmatpush1.msra.mxu0 0.0
    %219 = vmatprep.subr.mxu0 0.0
    %220 = vmatpush1.msra.mxu0 0.0
    %221 = vmatprep.mubr.f32.mxu0 0.0
    %222 = vmatmul.mubr.f32.gmra.mrb[0].mxu0 %v84
    %v223 = vpop.f32.mrb[0].mxu0
    %v224 = vadd.f32 %v78, %v223
    %v225 = vpop.f32.mrb[0].mxu0
    %226 = vdwg.mxu0
    %v227 = vmax.f32 %v153, 0.0
    %v228 = vmax.f32 %v155, 0.0
    %v229 = vmax.f32 %v224, 0.0
    %v230 = vld [vmem:[#allocation7] sm:$0xff]
    %v231 = vld [vmem:[#allocation7 + $0x8] sm:$0xff]
    %v232 = vld [vmem:[#allocation7 + $0x10] sm:$0xff]
    %v233 = vld [vmem:[#allocation7 + $0x18] sm:$0xff]
    %v234 = vld [vmem:[#allocation7 + $0x20] sm:$0xff]
    %v235 = vld [vmem:[#allocation7 + $0x28] sm:$0xff]
    %v236 = vld [vmem:[#allocation7 + $0x30] sm:$0xff]
    %v237 = vld [vmem:[#allocation7 + $0x38] sm:$0xff]
    %v238 = vld [vmem:[#allocation7 + $0x40] sm:$0xff]
    %v239 = vld [vmem:[#allocation7 + $0x48] sm:$0xff]
    %v240 = vld [vmem:[#allocation7 + $0x50] sm:$0xff]
    %v241 = vld [vmem:[#allocation7 + $0x58] sm:$0xff]
    %v242 = vld [vmem:[#allocation7 + $0x60] sm:$0xff]
    %v243 = vld [vmem:[#allocation7 + $0x68] sm:$0xff]
    %v244 = vld [vmem:[#allocation7 + $0x70] sm:$0xff]
    %v245 = vld [vmem:[#allocation7 + $0x78] sm:$0xff]
    %v246 = vld [vmem:[#allocation7 + $0x80] sm:$0xff]
    %v247 = vld [vmem:[#allocation7 + $0x88] sm:$0xff]
    %v248 = vld [vmem:[#allocation7 + $0x90] sm:$0xff]
    %v249 = vld [vmem:[#allocation7 + $0x98] sm:$0xff]
    %v250 = vld [vmem:[#allocation7 + $0xa0] sm:$0xff]
    %v251 = vld [vmem:[#allocation7 + $0xa8] sm:$0xff]
    %v252 = vld [vmem:[#allocation7 + $0xb0] sm:$0xff]
    %v253 = vld [vmem:[#allocation7 + $0xb8] sm:$0xff]
    %v254 = vld [vmem:[#allocation7 + $0xc0] sm:$0xff]
    %v255 = vld [vmem:[#allocation7 + $0xc8] sm:$0xff]
    %v256 = vld [vmem:[#allocation7 + $0xd0] sm:$0xff]
    %v257 = vld [vmem:[#allocation7 + $0xd8] sm:$0xff]
    %v258 = vld [vmem:[#allocation7 + $0xe0] sm:$0xff]
    %v259 = vld [vmem:[#allocation7 + $0xe8] sm:$0xff]
    %v260 = vld [vmem:[#allocation7 + $0xf0] sm:$0xff]
    %v261 = vld [vmem:[#allocation7 + $0xf8] sm:$0xff]
    %v262 = vld [vmem:[#allocation7 + $0x100] sm:$0xff]
    %v263 = vld [vmem:[#allocation7 + $0x108] sm:$0xff]
    %v264 = vld [vmem:[#allocation7 + $0x110] sm:$0xff]
    %v265 = vld [vmem:[#allocation7 + $0x118] sm:$0xff]
    %v266 = vld [vmem:[#allocation7 + $0x120] sm:$0xff]
    %v267 = vld [vmem:[#allocation7 + $0x128] sm:$0xff]
    %v268 = vld [vmem:[#allocation7 + $0x130] sm:$0xff]
    %v269 = vld [vmem:[#allocation7 + $0x138] sm:$0xff]
    %v270 = vld [vmem:[#allocation7 + $0x140] sm:$0xff]
    %v271 = vld [vmem:[#allocation7 + $0x148] sm:$0xff]
    %v272 = vld [vmem:[#allocation7 + $0x150] sm:$0xff]
    %v273 = vld [vmem:[#allocation7 + $0x158] sm:$0xff]
    %v274 = vld [vmem:[#allocation7 + $0x160] sm:$0xff]
    %v275 = vld [vmem:[#allocation7 + $0x168] sm:$0xff]
    %v276 = vld [vmem:[#allocation7 + $0x170] sm:$0xff]
    %v277 = vld [vmem:[#allocation7 + $0x178] sm:$0xff]
    %v278 = vld [vmem:[#allocation7 + $0x180] sm:$0x1]
    %v279 = vlaneseq
    %v280 = vshrl.u32 %v279, 7
    %v281 = vsub.s32 0, %v280
    %v282 = vrot.slane %v278, %v281
    %283 = vmatprep.subr.mxu0 0.0
    %284 = vmatpush1.msra.mxu0 %v230
    %285 = vmatprep.subr.mxu0 0.0
    %286 = vmatpush1.msra.mxu0 %v231
    %287 = vmatprep.subr.mxu0 0.0
    %288 = vmatpush1.msra.mxu0 %v232
    %289 = vmatprep.subr.mxu0 0.0
    %290 = vmatpush1.msra.mxu0 %v233
    %291 = vmatprep.subr.mxu0 0.0
    %292 = vmatpush1.msra.mxu0 %v234
    %293 = vmatprep.subr.mxu0 0.0
    %294 = vmatpush1.msra.mxu0 %v235
    %295 = vmatprep.subr.mxu0 0.0
    %296 = vmatpush1.msra.mxu0 %v236
    %297 = vmatprep.subr.mxu0 0.0
    %298 = vmatpush1.msra.mxu0 %v237
    %299 = vmatprep.subr.mxu0 0.0
    %300 = vmatpush1.msra.mxu0 %v238
    %301 = vmatprep.subr.mxu0 0.0
    %302 = vmatpush1.msra.mxu0 %v239
    %303 = vmatprep.subr.mxu0 0.0
    %304 = vmatpush1.msra.mxu0 %v240
    %305 = vmatprep.subr.mxu0 0.0
    %306 = vmatpush1.msra.mxu0 %v241
    %307 = vmatprep.subr.mxu0 0.0
    %308 = vmatpush1.msra.mxu0 %v242
    %309 = vmatprep.subr.mxu0 0.0
    %310 = vmatpush1.msra.mxu0 %v243
    %311 = vmatprep.subr.mxu0 0.0
    %312 = vmatpush1.msra.mxu0 %v244
    %313 = vmatprep.subr.mxu0 0.0
    %314 = vmatpush1.msra.mxu0 %v245
    %315 = vmatprep.subr.mxu0 0.0
    %316 = vmatpush1.msra.mxu0 %v246
    %317 = vmatprep.subr.mxu0 0.0
    %318 = vmatpush1.msra.mxu0 %v247
    %319 = vmatprep.subr.mxu0 0.0
    %320 = vmatpush1.msra.mxu0 %v248
    %321 = vmatprep.subr.mxu0 0.0
    %322 = vmatpush1.msra.mxu0 %v249
    %323 = vmatprep.subr.mxu0 0.0
    %324 = vmatpush1.msra.mxu0 %v250
    %325 = vmatprep.subr.mxu0 0.0
    %326 = vmatpush1.msra.mxu0 %v251
    %327 = vmatprep.subr.mxu0 0.0
    %328 = vmatpush1.msra.mxu0 %v252
    %329 = vmatprep.subr.mxu0 0.0
    %330 = vmatpush1.msra.mxu0 %v253
    %331 = vmatprep.subr.mxu0 0.0
    %332 = vmatpush1.msra.mxu0 %v254
    %333 = vmatprep.subr.mxu0 0.0
    %334 = vmatpush1.msra.mxu0 %v255
    %335 = vmatprep.subr.mxu0 0.0
    %336 = vmatpush1.msra.mxu0 %v256
    %337 = vmatprep.subr.mxu0 0.0
    %338 = vmatpush1.msra.mxu0 %v257
    %339 = vmatprep.subr.mxu0 0.0
    %340 = vmatpush1.msra.mxu0 %v258
    %341 = vmatprep.subr.mxu0 0.0
    %342 = vmatpush1.msra.mxu0 %v259
    %343 = vmatprep.subr.mxu0 0.0
    %344 = vmatpush1.msra.mxu0 %v260
    %345 = vmatprep.subr.mxu0 0.0
    %346 = vmatpush1.msra.mxu0 %v261
    %347 = vmatprep.mubr.f32.mxu0 %v228
    %348 = vmatmul.mubr.f32.gmra.mrb[0].mxu0 %v227
    %v349 = vpop.f32.mrb[0].mxu0
    %v350 = vadd.f32 %v282, %v349
    %v351 = vpop.f32.mrb[0].mxu0
    %352 = vdwg.mxu0
    %353 = vmatprep.subr.mxu0 0.0
    %354 = vmatpush1.msra.mxu0 %v262
    %355 = vmatprep.subr.mxu0 0.0
    %356 = vmatpush1.msra.mxu0 %v263
    %357 = vmatprep.subr.mxu0 0.0
    %358 = vmatpush1.msra.mxu0 %v264
    %359 = vmatprep.subr.mxu0 0.0
    %360 = vmatpush1.msra.mxu0 %v265
    %361 = vmatprep.subr.mxu0 0.0
    %362 = vmatpush1.msra.mxu0 %v266
    %363 = vmatprep.subr.mxu0 0.0
    %364 = vmatpush1.msra.mxu0 %v267
    %365 = vmatprep.subr.mxu0 0.0
    %366 = vmatpush1.msra.mxu0 %v268
    %367 = vmatprep.subr.mxu0 0.0
    %368 = vmatpush1.msra.mxu0 %v269
    %369 = vmatprep.subr.mxu0 0.0
    %370 = vmatpush1.msra.mxu0 %v270
    %371 = vmatprep.subr.mxu0 0.0
    %372 = vmatpush1.msra.mxu0 %v271
    %373 = vmatprep.subr.mxu0 0.0
    %374 = vmatpush1.msra.mxu0 %v272
    %375 = vmatprep.subr.mxu0 0.0
    %376 = vmatpush1.msra.mxu0 %v273
    %377 = vmatprep.subr.mxu0 0.0
    %378 = vmatpush1.msra.mxu0 %v274
    %379 = vmatprep.subr.mxu0 0.0
    %380 = vmatpush1.msra.mxu0 %v275
    %381 = vmatprep.subr.mxu0 0.0
    %382 = vmatpush1.msra.mxu0 %v276
    %383 = vmatprep.subr.mxu0 0.0
    %384 = vmatpush1.msra.mxu0 %v277
    %385 = vmatprep.subr.mxu0 0.0
    %386 = vmatpush1.msra.mxu0 0.0
    %387 = vmatprep.subr.mxu0 0.0
    %388 = vmatpush1.msra.mxu0 0.0
    %389 = vmatprep.subr.mxu0 0.0
    %390 = vmatpush1.msra.mxu0 0.0
    %391 = vmatprep.subr.mxu0 0.0
    %392 = vmatpush1.msra.mxu0 0.0
    %393 = vmatprep.subr.mxu0 0.0
    %394 = vmatpush1.msra.mxu0 0.0
    %395 = vmatprep.subr.mxu0 0.0
    %396 = vmatpush1.msra.mxu0 0.0
    %397 = vmatprep.subr.mxu0 0.0
    %398 = vmatpush1.msra.mxu0 0.0
    %399 = vmatprep.subr.mxu0 0.0
    %400 = vmatpush1.msra.mxu0 0.0
    %401 = vmatprep.subr.mxu0 0.0
    %402 = vmatpush1.msra.mxu0 0.0
    %403 = vmatprep.subr.mxu0 0.0
    %404 = vmatpush1.msra.mxu0 0.0
    %405 = vmatprep.subr.mxu0 0.0
    %406 = vmatpush1.msra.mxu0 0.0
    %407 = vmatprep.subr.mxu0 0.0
    %408 = vmatpush1.msra.mxu0 0.0
    %409 = vmatprep.subr.mxu0 0.0
    %410 = vmatpush1.msra.mxu0 0.0
    %411 = vmatprep.subr.mxu0 0.0
    %412 = vmatpush1.msra.mxu0 0.0
    %413 = vmatprep.subr.mxu0 0.0
    %414 = vmatpush1.msra.mxu0 0.0
    %415 = vmatprep.subr.mxu0 0.0
    %416 = vmatpush1.msra.mxu0 0.0
    %417 = vmatprep.mubr.f32.mxu0 0.0
    %418 = vmatmul.mubr.f32.gmra.mrb[0].mxu0 %v229
    %v419 = vpop.f32.mrb[0].mxu0
    %v420 = vadd.f32 %v350, %v419
    %v421 = vpop.f32.mrb[0].mxu0
    %422 = vdwg.mxu0
    %423 = vst [vmem:[#allocation8] sm:$0x3] %v420
    // Predicated region
    $region26: #{customnn_forward.1} parent=1 // pred_check
      _
    $region27: #{customnn_forward.1} parent=1 // pred_check_branch
      %425 = sbr.rel (0) target = $region29
    $region28: #{customnn_forward.1} parent=1 // pred_region
      %s427 = ssub.s32 32, 32
      %428 = vsyncadd [#allocation4], %s427
      %s430 = sshll.u32 [#allocation8], 4
      %s431 = int_to_ptr.vmem [resolvable:$true] %s430
      %433 = dma.vmem_to_hbm [thread:$0]  %s431, 32, %s3, [#allocation4]
    $region29: #{customnn_forward.1} parent=1 // pred_fallthru
      _
    // Predicated region
    $region30: #{customnn_forward.1} parent=1 // pred_check
      _
    $region31: #{customnn_forward.1} parent=1 // pred_check_branch
      %435 = sbr.rel (0) target = $region33
    $region32: #{customnn_forward.1} parent=1 // pred_region
      %436 = dma.done [#allocation4], 32
    $region33: #{customnn_forward.1} parent=1 // pred_fallthru
      _
    %437 = vsyncpa [#allocation3], 1
    %438 = vsyncpa [#allocation6], 1
    %439 = vsyncpa [#allocation4], 1

</llo_original>
